<compile_context>
chip_gen: v7x
topology: tpu7x:2x2x1
jax: 0.10.0
libtpu: 0.0.40
codegen_flags: <defaults>
</compile_context>

<pallas_src>
import jax
import jax.numpy as jnp
from jax.experimental import pallas as pl
from jax.experimental.pallas import tpu as pltpu

LEAKY_SLOPE = 0.01     # F.leaky_relu default negative_slope
LANE = 128
SUBLANE = 8
K_PAD = 16             # bf16 sublane tile for the fc1 contraction dim
BLOCK_B = 512          # max batch-tile rows (amortizes per-step overhead)


def _leaky_relu(x):
    return jnp.where(x >= 0, x, LEAKY_SLOPE * x)


def _round_up(x, m):
    return (x + m - 1) // m * m


def _pad2d(x, rows, cols):
    r, c = x.shape
    return jnp.pad(x, ((0, rows - r), (0, cols - c)))


def _pick_tile(batch):
    """Pick (tb, bp): batch tile and padded batch.

    Keeps last-tile padding small, and forces >= 2 grid steps whenever the
    batch is big enough (>= 2 sublanes) so both v7x TensorCores get work.
    """
    bp_min = _round_up(batch, SUBLANE)
    if bp_min <= SUBLANE:
        return bp_min, bp_min                       # tiny batch: one tile
    n_tiles = max(pl.cdiv(bp_min, BLOCK_B), 2)      # >=2 for megacore / v7x
    tb = _round_up(pl.cdiv(bp_min, n_tiles), SUBLANE)
    bp = _round_up(bp_min, tb)
    return tb, bp


def actor_kernel(state_ref, w1_ref, b1_ref, w2_ref, b2_ref, w3_ref, b3_ref,
                 out_ref):
    # fc1 + leaky_relu: bf16 MXU operands, f32 accumulation, f32 elementwise.
    h1 = jnp.dot(state_ref[...].astype(jnp.bfloat16), w1_ref[...],
                 preferred_element_type=jnp.float32) + b1_ref[...]
    x1 = _leaky_relu(h1)

    # fc2 + leaky_relu
    h2 = jnp.dot(x1.astype(jnp.bfloat16), w2_ref[...],
                 preferred_element_type=jnp.float32) + b2_ref[...]
    x2 = _leaky_relu(h2)

    # fc3 in full f32 (tiny matmul, keeps the 0.003-scale weights exact),
    # then leaky_relu + tanh (tanh rides the EUP slot).
    h3 = jnp.dot(x2, w3_ref[...],
                 preferred_element_type=jnp.float32) + b3_ref[...]
    out_ref[...] = jnp.tanh(_leaky_relu(h3))


def prepare_params(params):
    """One-time weight preparation: pad to lane/sublane tiles, cast W1/W2 to
    bf16 (halves weight DMA/VMEM), keep W3 + all biases in f32."""
    w1, b1, w2, b2, w3, b3 = params
    s, f1 = w1.shape
    f2 = w2.shape[1]
    act = w3.shape[1]

    sp = _round_up(s, K_PAD)      # fc1 K dim: 16-multiple only (not 128)
    f1p = _round_up(f1, LANE)
    f2p = _round_up(f2, LANE)
    ap = _round_up(act, LANE)

    w1p = _pad2d(w1, sp, f1p).astype(jnp.bfloat16)
    w2p = _pad2d(w2, f1p, f2p).astype(jnp.bfloat16)
    w3p = _pad2d(w3, f2p, ap).astype(jnp.float32)
    b1p = _pad2d(b1, 1, f1p).astype(jnp.float32)
    b2p = _pad2d(b2, 1, f2p).astype(jnp.float32)
    b3p = _pad2d(b3, 1, ap).astype(jnp.float32)
    return (w1p, b1p, w2p, b2p, w3p, b3p)


def _actor_forward(state, prep, action_size):
    w1p, b1p, w2p, b2p, w3p, b3p = prep
    batch = state.shape[0]
    sp, f1p = w1p.shape
    f2p = w2p.shape[1]
    ap = w3p.shape[1]

    tb, bp = _pick_tile(batch)
    grid = (bp // tb,)

    # Only the state needs per-call padding (rows to bp, K to sp).
    state_p = _pad2d(state, bp, sp)

    const = lambda i: (0, 0)

    flops = 2 * bp * (sp * f1p + f1p * f2p + f2p * ap)
    bytes_accessed = (bp * sp * 4                                        # state
                      + (sp * f1p + f1p * f2p) * 2 + f2p * ap * 4       # weights
                      + (f1p + f2p + ap) * 4                            # biases
                      + bp * ap * 4)                                    # output

    out_p = pl.pallas_call(
        actor_kernel,
        out_shape=jax.ShapeDtypeStruct((bp, ap), jnp.float32),
        grid=grid,
        in_specs=[
            pl.BlockSpec((tb, sp), lambda i: (i, 0)),    # state tile (streams)
            pl.BlockSpec((sp, f1p), const),              # W1 bf16 (resident)
            pl.BlockSpec((1, f1p), const),               # b1
            pl.BlockSpec((f1p, f2p), const),             # W2 bf16 (resident)
            pl.BlockSpec((1, f2p), const),               # b2
            pl.BlockSpec((f2p, ap), const),              # W3 f32 (resident)
            pl.BlockSpec((1, ap), const),                # b3
        ],
        out_specs=pl.BlockSpec((tb, ap), lambda i: (i, 0)),
        compiler_params=pltpu.CompilerParams(
            dimension_semantics=("parallel",)),
        cost_estimate=pl.CostEstimate(
            flops=flops,
            transcendentals=bp * ap,
            bytes_accessed=bytes_accessed),
    )(state_p, w1p, b1p, w2p, b2p, w3p, b3p)

    # Strip batch / action padding outside the kernel.
    return out_p[:batch, :action_size]


actor_forward = jax.jit(_actor_forward, static_argnums=(2,))


def init_params(key, state_size, action_size, fc1u=400, fc2u=300):
    """Deterministic synthetic init mimicking the PyTorch reset_parameters().

    PyTorch stores Linear weights as (out, in); we store the transpose
    (in, out).  hidden_init uses weight.size(0) == out_features (the D4PG
    quirk); biases keep the nn.Linear default U(+-1/sqrt(in_features)).
    """
    ks = jax.random.split(key, 6)

    def uniform(k, shape, lim):
        return jax.random.uniform(k, shape, jnp.float32, -lim, lim)

    w1 = uniform(ks[0], (state_size, fc1u), 1.0 / (fc1u ** 0.5))
    b1 = uniform(ks[1], (1, fc1u), 1.0 / (state_size ** 0.5))
    w2 = uniform(ks[2], (fc1u, fc2u), 1.0 / (fc2u ** 0.5))
    b2 = uniform(ks[3], (1, fc2u), 1.0 / (fc1u ** 0.5))
    w3 = uniform(ks[4], (fc2u, action_size), 0.003)
    b3 = uniform(ks[5], (1, action_size), 1.0 / (fc2u ** 0.5))
    return (w1, b1, w2, b2, w3, b3)


def actor_ref(state, params):
    """Pure-JAX f32 reference for correctness checking."""
    w1, b1, w2, b2, w3, b3 = params
    x = state @ w1 + b1
    x = jnp.where(x >= 0, x, LEAKY_SLOPE * x)
    x = x @ w2 + b2
    x = jnp.where(x >= 0, x, LEAKY_SLOPE * x)
    x = x @ w3 + b3
    x = jnp.where(x >= 0, x, LEAKY_SLOPE * x)
    return jnp.tanh(x)


if __name__ == "__main__":
    # Small shapes consistent with the module defaults:
    # state_size=33, action_size=4, fc1_units=400, fc2_units=300, batch=8.
    batch, state_size, action_size = 8, 33, 4
    fc1u, fc2u = 400, 300

    key = jax.random.PRNGKey(0)
    k_state, k_params = jax.random.split(key)

    state = jax.random.normal(k_state, (batch, state_size), jnp.float32)
    params = init_params(k_params, state_size, action_size, fc1u, fc2u)

    # One-time weight preparation (hoisted out of the per-call path).
    prep = jax.tree_util.tree_map(jax.block_until_ready, prepare_params(params))

    out = actor_forward(state, prep, action_size)
    out = jax.block_until_ready(out)

    ref = actor_ref(state, params)
    assert out.shape == (batch, action_size), out.shape
    # fc1/fc2 use bf16 MXU operands (f32 accumulation); fc3 is full f32.
    assert jnp.allclose(out, ref, atol=5e-3, rtol=5e-3), \
        float(jnp.max(jnp.abs(out - ref)))

    # Also exercise a larger, non-tile-aligned batch (multi-step grid path).
    big = 260
    state_big = jax.random.normal(jax.random.PRNGKey(1), (big, state_size),
                                  jnp.float32)
    out_big = jax.block_until_ready(actor_forward(state_big, prep, action_size))
    ref_big = actor_ref(state_big, params)
    assert out_big.shape == (big, action_size), out_big.shape
    assert jnp.allclose(out_big, ref_big, atol=5e-3, rtol=5e-3), \
        float(jnp.max(jnp.abs(out_big - ref_big)))

    print("KERNEL_OK")
</pallas_src>

<mosaic_0001>
module attributes {stable_mosaic.version = 11 : i64} {
  func.func @actor_kernel(%arg0: i32, %arg1: memref<8x48xf32, #tpu.memory_space<vmem>>, %arg2: memref<48x512xbf16, #tpu.memory_space<vmem>>, %arg3: memref<1x512xf32, #tpu.memory_space<vmem>>, %arg4: memref<512x384xbf16, #tpu.memory_space<vmem>>, %arg5: memref<1x384xf32, #tpu.memory_space<vmem>>, %arg6: memref<384x128xf32, #tpu.memory_space<vmem>>, %arg7: memref<1x128xf32, #tpu.memory_space<vmem>>, %arg8: memref<8x128xf32, #tpu.memory_space<vmem>>) attributes {dimension_semantics = [#tpu.dimension_semantics<parallel>], iteration_bounds = array<i64: 1>, scalar_prefetch = 0 : i64, scratch_operands = 0 : i64, tpu.core_type = #tpu.core_type<tc>, window_params = [{transform_indices = @transform_0, window_bounds = array<i64: 8, 48>}, {pipeline_mode = #tpu.pipeline_mode<synchronous>, transform_indices = @transform_1, window_bounds = array<i64: 48, 512>}, {pipeline_mode = #tpu.pipeline_mode<synchronous>, transform_indices = @transform_2, window_bounds = array<i64: 1, 512>}, {pipeline_mode = #tpu.pipeline_mode<synchronous>, transform_indices = @transform_3, window_bounds = array<i64: 512, 384>}, {pipeline_mode = #tpu.pipeline_mode<synchronous>, transform_indices = @transform_4, window_bounds = array<i64: 1, 384>}, {pipeline_mode = #tpu.pipeline_mode<synchronous>, transform_indices = @transform_5, window_bounds = array<i64: 384, 128>}, {pipeline_mode = #tpu.pipeline_mode<synchronous>, transform_indices = @transform_6, window_bounds = array<i64: 1, 128>}, {transform_indices = @transform_7, window_bounds = array<i64: 8, 128>}]} {
    %c0 = arith.constant 0 : index
    %c0_0 = arith.constant 0 : index
    %0 = vector.load %arg1[%c0, %c0_0] : memref<8x48xf32, #tpu.memory_space<vmem>>, vector<8x48xf32>
    %1 = arith.truncf %0 : vector<8x48xf32> to vector<8x48xbf16>
    %c0_1 = arith.constant 0 : index
    %c0_2 = arith.constant 0 : index
    %2 = vector.load %arg2[%c0_1, %c0_2] : memref<48x512xbf16, #tpu.memory_space<vmem>>, vector<48x512xbf16>
    %cst = arith.constant dense<0.000000e+00> : vector<8x512xf32>
    %3 = tpu.matmul %1, %2, %cst {dimension_numbers = #tpu.dot_dimension_numbers<[1], [0], [0], [1], [0, 0, 1, 1], [], []>} : vector<8x48xbf16>, vector<48x512xbf16>, vector<8x512xf32> -> vector<8x512xf32>
    %c0_3 = arith.constant 0 : index
    %c0_4 = arith.constant 0 : index
    %4 = vector.load %arg3[%c0_3, %c0_4] : memref<1x512xf32, #tpu.memory_space<vmem>>, vector<1x512xf32>
    %5 = vector.broadcast %4 : vector<1x512xf32> to vector<8x512xf32>
    %6 = arith.addf %3, %5 : vector<8x512xf32>
    %cst_5 = arith.constant 0.000000e+00 : f32
    %7 = vector.broadcast %cst_5 : f32 to vector<8x512xf32>
    %8 = arith.cmpf oge, %6, %7 : vector<8x512xf32>
    %cst_6 = arith.constant 0.00999999977 : f32
    %9 = vector.broadcast %cst_6 : f32 to vector<8x512xf32>
    %10 = arith.mulf %9, %6 : vector<8x512xf32>
    %11 = arith.select %8, %6, %10 : vector<8x512xi1>, vector<8x512xf32>
    %12 = arith.truncf %11 : vector<8x512xf32> to vector<8x512xbf16>
    %c0_7 = arith.constant 0 : index
    %c0_8 = arith.constant 0 : index
    %13 = vector.load %arg4[%c0_7, %c0_8] : memref<512x384xbf16, #tpu.memory_space<vmem>>, vector<512x384xbf16>
    %cst_9 = arith.constant dense<0.000000e+00> : vector<8x384xf32>
    %14 = tpu.matmul %12, %13, %cst_9 {dimension_numbers = #tpu.dot_dimension_numbers<[1], [0], [0], [1], [0, 0, 1, 1], [], []>} : vector<8x512xbf16>, vector<512x384xbf16>, vector<8x384xf32> -> vector<8x384xf32>
    %c0_10 = arith.constant 0 : index
    %c0_11 = arith.constant 0 : index
    %15 = vector.load %arg5[%c0_10, %c0_11] : memref<1x384xf32, #tpu.memory_space<vmem>>, vector<1x384xf32>
    %16 = vector.broadcast %15 : vector<1x384xf32> to vector<8x384xf32>
    %17 = arith.addf %14, %16 : vector<8x384xf32>
    %cst_12 = arith.constant 0.000000e+00 : f32
    %18 = vector.broadcast %cst_12 : f32 to vector<8x384xf32>
    %19 = arith.cmpf oge, %17, %18 : vector<8x384xf32>
    %cst_13 = arith.constant 0.00999999977 : f32
    %20 = vector.broadcast %cst_13 : f32 to vector<8x384xf32>
    %21 = arith.mulf %20, %17 : vector<8x384xf32>
    %22 = arith.select %19, %17, %21 : vector<8x384xi1>, vector<8x384xf32>
    %c0_14 = arith.constant 0 : index
    %c0_15 = arith.constant 0 : index
    %23 = vector.load %arg6[%c0_14, %c0_15] : memref<384x128xf32, #tpu.memory_space<vmem>>, vector<384x128xf32>
    %cst_16 = arith.constant dense<0.000000e+00> : vector<8x128xf32>
    %24 = tpu.matmul %22, %23, %cst_16 {dimension_numbers = #tpu.dot_dimension_numbers<[1], [0], [0], [1], [0, 0, 1, 1], [], []>} : vector<8x384xf32>, vector<384x128xf32>, vector<8x128xf32> -> vector<8x128xf32>
    %c0_17 = arith.constant 0 : index
    %c0_18 = arith.constant 0 : index
    %25 = vector.load %arg7[%c0_17, %c0_18] : memref<1x128xf32, #tpu.memory_space<vmem>>, vector<1x128xf32>
    %26 = vector.broadcast %25 : vector<1x128xf32> to vector<8x128xf32>
    %27 = arith.addf %24, %26 : vector<8x128xf32>
    %cst_19 = arith.constant 0.000000e+00 : f32
    %28 = vector.broadcast %cst_19 : f32 to vector<8x128xf32>
    %29 = arith.cmpf oge, %27, %28 : vector<8x128xf32>
    %cst_20 = arith.constant 0.00999999977 : f32
    %30 = vector.broadcast %cst_20 : f32 to vector<8x128xf32>
    %31 = arith.mulf %30, %27 : vector<8x128xf32>
    %32 = arith.select %29, %27, %31 : vector<8x128xi1>, vector<8x128xf32>
    %33 = math.tanh %32 : vector<8x128xf32>
    %c0_21 = arith.constant 0 : index
    %c0_22 = arith.constant 0 : index
    %34 = vector.load %arg8[%c0_21, %c0_22] : memref<8x128xf32, #tpu.memory_space<vmem>>, vector<8x128xf32>
    tpu.vector_store %arg8[%c0_21, %c0_22], %33 {strides = array<i32>} : memref<8x128xf32, #tpu.memory_space<vmem>>, vector<8x128xf32>,
    return
  }
  func.func @transform_0(%arg0: i32) -> (i32, i32) {
    %c0_i32 = arith.constant 0 : i32
    %c0_i32_0 = arith.constant 0 : i32
    return %arg0, %c0_i32 : i32, i32
  }
  func.func @transform_1(%arg0: i32) -> (i32, i32) {
    %c0_i32 = arith.constant 0 : i32
    %c0_i32_0 = arith.constant 0 : i32
    %c0_i32_1 = arith.constant 0 : i32
    return %c0_i32, %c0_i32_0 : i32, i32
  }
  func.func @transform_2(%arg0: i32) -> (i32, i32) {
    %c0_i32 = arith.constant 0 : i32
    %c0_i32_0 = arith.constant 0 : i32
    %c0_i32_1 = arith.constant 0 : i32
    return %c0_i32, %c0_i32_0 : i32, i32
  }
  func.func @transform_3(%arg0: i32) -> (i32, i32) {
    %c0_i32 = arith.constant 0 : i32
    %c0_i32_0 = arith.constant 0 : i32
    %c0_i32_1 = arith.constant 0 : i32
    return %c0_i32, %c0_i32_0 : i32, i32
  }
  func.func @transform_4(%arg0: i32) -> (i32, i32) {
    %c0_i32 = arith.constant 0 : i32
    %c0_i32_0 = arith.constant 0 : i32
    %c0_i32_1 = arith.constant 0 : i32
    return %c0_i32, %c0_i32_0 : i32, i32
  }
  func.func @transform_5(%arg0: i32) -> (i32, i32) {
    %c0_i32 = arith.constant 0 : i32
    %c0_i32_0 = arith.constant 0 : i32
    %c0_i32_1 = arith.constant 0 : i32
    return %c0_i32, %c0_i32_0 : i32, i32
  }
  func.func @transform_6(%arg0: i32) -> (i32, i32) {
    %c0_i32 = arith.constant 0 : i32
    %c0_i32_0 = arith.constant 0 : i32
    %c0_i32_1 = arith.constant 0 : i32
    return %c0_i32, %c0_i32_0 : i32, i32
  }
  func.func @transform_7(%arg0: i32) -> (i32, i32) {
    %c0_i32 = arith.constant 0 : i32
    %c0_i32_0 = arith.constant 0 : i32
    return %arg0, %c0_i32 : i32, i32
  }
}

</mosaic_0001>

<llo_original>
// kernel: _actor_forward.1
$region0: #{_actor_forward.1}
  #allocation0 [shape = 'u32[]', space=smem, size = 0x4, offset = 0x4, fixed_abs, tag = 'smem constant byte address 0x4 - core index']
  #allocation1 [shape = 'u32[144,128]{1,0:T(1,128)}', space=vmem, size = 0x12000, scoped, tag = 'internal scratch']
  %s0 = inlined_call_operand.vmem [shape: f32[8,48], index: 0, kind: input, shape index: {}]
  %s1 = inlined_call_operand.hbm [shape: bf16[48,512], index: 1, kind: input, shape index: {}]
  %s2 = inlined_call_operand.vmem [shape: f32[1,512], index: 2, kind: input, shape index: {}]
  %s3 = inlined_call_operand.hbm [shape: bf16[512,384], index: 3, kind: input, shape index: {}]
  %s4 = inlined_call_operand.vmem [shape: f32[1,384], index: 4, kind: input, shape index: {}]
  %s5 = inlined_call_operand.hbm [shape: f32[384,128], index: 5, kind: input, shape index: {}]
  %s6 = inlined_call_operand.vmem [shape: f32[1,128], index: 6, kind: input, shape index: {}]
  %s7 = inlined_call_operand.vmem [shape: f32[8,128], index: 7, kind: output, shape index: {}]
  %s8 = sld [smem:[#allocation0]]
  $region50: #{_actor_forward.1} parent=0
    _
  %s10 = ssub.s32 1, %s8
  %s11 = scalar_select 0, %s10, %s8
  $region1: #{_actor_forward.1} parent=0
    #allocation2 [shape = 'u8[49152]{0}', space=vmem, size = 0xc000, scoped, tag = 'input window, operand 1, single buffered']
    #allocation3 [shape = 's32[1]{0}', space=sflag, size = 0x4, scoped, tag = 'scoped memory for _actor_forward.1']
    #allocation4 [shape = 'u8[393216]{0}', space=vmem, size = 0x60000, scoped, tag = 'input window, operand 3, single buffered']
    #allocation5 [shape = 's32[1]{0}', space=sflag, size = 0x4, scoped, tag = 'scoped memory for _actor_forward.1']
    #allocation6 [shape = 'u8[196608]{0}', space=vmem, size = 0x30000, scoped, tag = 'input window, operand 5, single buffered']
    %12 = vsyncpa [#allocation3], 0
    %13 = vsyncpa [#allocation5], 0
    // Predicated region
    $region2: #{_actor_forward.1} parent=1 // pred_check
      _
    $region3: #{_actor_forward.1} parent=1 // pred_check_branch
      %15 = sbr.rel (0) target = $region5
    $region4: #{_actor_forward.1} parent=1 // pred_region
      _
    $region5: #{_actor_forward.1} parent=1 // pred_fallthru
      _
    // Predicated region
    $region6: #{_actor_forward.1} parent=1 // pred_check
      _
    $region7: #{_actor_forward.1} parent=1 // pred_check_branch
      %17 = sbr.rel (0) target = $region9
    $region8: #{_actor_forward.1} parent=1 // pred_region
      %s19 = ssub.s32 1536, 1536
      %20 = vsyncadd [#allocation3], %s19
      %s21 = sshll.u32 [#allocation2], 4
      %s22 = int_to_ptr.vmem [resolvable:$true] %s21
      %27 = dma.hbm_to_vmem [thread:$0]  %s1, 1536, %s22, [#allocation3], 256, 256, 16
    $region9: #{_actor_forward.1} parent=1 // pred_fallthru
      _
    // Predicated region
    $region10: #{_actor_forward.1} parent=1 // pred_check
      _
    $region11: #{_actor_forward.1} parent=1 // pred_check_branch
      %29 = sbr.rel (0) target = $region13
    $region12: #{_actor_forward.1} parent=1 // pred_region
      _
    $region13: #{_actor_forward.1} parent=1 // pred_fallthru
      _
    // Predicated region
    $region14: #{_actor_forward.1} parent=1 // pred_check
      _
    $region15: #{_actor_forward.1} parent=1 // pred_check_branch
      %31 = sbr.rel (0) target = $region17
    $region16: #{_actor_forward.1} parent=1 // pred_region
      %s33 = ssub.s32 12288, 12288
      %34 = vsyncadd [#allocation5], %s33
      %s35 = sshll.u32 [#allocation4], 4
      %s36 = int_to_ptr.vmem [resolvable:$true] %s35
      %41 = dma.hbm_to_vmem [thread:$0]  %s3, 12288, %s36, [#allocation5], 192, 192, 12
    $region17: #{_actor_forward.1} parent=1 // pred_fallthru
      _
    // Predicated region
    $region18: #{_actor_forward.1} parent=1 // pred_check
      _
    $region19: #{_actor_forward.1} parent=1 // pred_check_branch
      %43 = sbr.rel (0) target = $region21
    $region20: #{_actor_forward.1} parent=1 // pred_region
      _
    $region21: #{_actor_forward.1} parent=1 // pred_fallthru
      _
    // Predicated region
    $region22: #{_actor_forward.1} parent=1 // pred_check
      _
    $region23: #{_actor_forward.1} parent=1 // pred_check_branch
      %45 = sbr.rel (0) target = $region25
    $region24: #{_actor_forward.1} parent=1 // pred_region
      %s47 = ssub.s32 6144, 6144
      %48 = vsyncadd [#allocation5], %s47
      %s49 = sshll.u32 [#allocation6], 4
      %s50 = int_to_ptr.vmem [resolvable:$true] %s49
      %55 = dma.hbm_to_vmem [thread:$0]  %s5, 6144, %s50, [#allocation5], 128, 128, 8
    $region25: #{_actor_forward.1} parent=1 // pred_fallthru
      _
    // Predicated region
    $region26: #{_actor_forward.1} parent=1 // pred_check
      _
    $region27: #{_actor_forward.1} parent=1 // pred_check_branch
      %57 = sbr.rel (0) target = $region29
    $region28: #{_actor_forward.1} parent=1 // pred_region
      _
    $region29: #{_actor_forward.1} parent=1 // pred_fallthru
      _
    // Predicated region
    $region30: #{_actor_forward.1} parent=1 // pred_check
      _
    $region31: #{_actor_forward.1} parent=1 // pred_check_branch
      %59 = sbr.rel (0) target = $region33
    $region32: #{_actor_forward.1} parent=1 // pred_region
      %60 = dma.done [#allocation3], 1536
    $region33: #{_actor_forward.1} parent=1 // pred_fallthru
      _
    // Predicated region
    $region34: #{_actor_forward.1} parent=1 // pred_check
      _
    $region35: #{_actor_forward.1} parent=1 // pred_check_branch
      %62 = sbr.rel (0) target = $region37
    $region36: #{_actor_forward.1} parent=1 // pred_region
      %63 = dma.done [#allocation5], 12288
    $region37: #{_actor_forward.1} parent=1 // pred_fallthru
      _
    // Predicated region
    $region38: #{_actor_forward.1} parent=1 // pred_check
      _
    $region39: #{_actor_forward.1} parent=1 // pred_check_branch
      %65 = sbr.rel (0) target = $region41
    $region40: #{_actor_forward.1} parent=1 // pred_region
      %66 = dma.done [#allocation5], 6144
    $region41: #{_actor_forward.1} parent=1 // pred_fallthru
      _
    %v68 = vld [vmem:[%s0] sm:$0xff]
    %v69 = vpack.c.bf16 %v68, %v68
    %v70 = vld [vmem:[#allocation2] sm:$0xff]
    %v71 = vld [vmem:[#allocation2 + $0x8] sm:$0xff]
    %v72 = vld [vmem:[#allocation2 + $0x10] sm:$0xff]
    %v73 = vld [vmem:[#allocation2 + $0x18] sm:$0xff]
    %v74 = vld [vmem:[#allocation2 + $0x20] sm:$0xff]
    %v75 = vld [vmem:[#allocation2 + $0x28] sm:$0xff]
    %v76 = vld [vmem:[#allocation2 + $0x30] sm:$0xff]
    %v77 = vld [vmem:[#allocation2 + $0x38] sm:$0xff]
    %v78 = vld [vmem:[#allocation2 + $0x40] sm:$0xff]
    %v79 = vld [vmem:[#allocation2 + $0x48] sm:$0xff]
    %v80 = vld [vmem:[#allocation2 + $0x50] sm:$0xff]
    %v81 = vld [vmem:[#allocation2 + $0x58] sm:$0xff]
    %v82 = vld [vmem:[%s2] sm:$0xf]
    %v84 = vlaneseq
    %v85 = vshrl.u32 %v84, 7
    %v86 = vsub.s32 0, %v85
    %v87 = vrot.slane %v82, %v86
    %v88 = vlaneseq
    %v89 = vshrl.u32 %v88, 7
    %v90 = vsub.s32 1, %v89
    %v91 = vrot.slane %v82, %v90
    %v92 = vlaneseq
    %v93 = vshrl.u32 %v92, 7
    %v94 = vsub.s32 2, %v93
    %v95 = vrot.slane %v82, %v94
    %v96 = vlaneseq
    %v97 = vshrl.u32 %v96, 7
    %v98 = vsub.s32 3, %v97
    %v99 = vrot.slane %v82, %v98
    %v116 = vunpack.c.l.b16 %v70
    %v117 = vunpack.c.h.b16 %v70
    %v118 = vunpack.c.l.b16 %v71
    %v119 = vunpack.c.h.b16 %v71
    %v120 = vunpack.c.l.b16 %v72
    %v121 = vunpack.c.h.b16 %v72
    %v122 = vunpack.c.l.b16 %v73
    %v123 = vunpack.c.h.b16 %v73
    %v124 = vunpack.c.l.b16 %v74
    %v125 = vunpack.c.h.b16 %v74
    %v126 = vunpack.c.l.b16 %v75
    %v127 = vunpack.c.h.b16 %v75
    %v128 = vunpack.c.l.b16 %v76
    %v129 = vunpack.c.h.b16 %v76
    %v130 = vunpack.c.l.b16 %v77
    %v131 = vunpack.c.h.b16 %v77
    %v132 = vunpack.c.l.b16 %v78
    %v133 = vunpack.c.h.b16 %v78
    %v134 = vunpack.c.l.b16 %v79
    %v135 = vunpack.c.h.b16 %v79
    %v136 = vunpack.c.l.b16 %v80
    %v137 = vunpack.c.h.b16 %v80
    %v138 = vunpack.c.l.b16 %v81
    %v139 = vunpack.c.h.b16 %v81
    %v140 = vpack.c.b16 %v120, %v116
    %v141 = vpack.c.b16 %v121, %v117
    %v142 = vpack.c.b16 %v122, %v118
    %v143 = vpack.c.b16 %v123, %v119
    %v144 = vpack.c.b16 %v128, %v124
    %v145 = vpack.c.b16 %v129, %v125
    %v146 = vpack.c.b16 %v130, %v126
    %v147 = vpack.c.b16 %v131, %v127
    %v148 = vpack.c.b16 %v136, %v132
    %v149 = vpack.c.b16 %v137, %v133
    %v150 = vpack.c.b16 %v138, %v134
    %v151 = vpack.c.b16 %v139, %v135
    %vm164 = vcmask 392192
    %v166 = vsel %vm164, %v69, 0
    %168 = vmatprep.subr.bf16.mxu0 %v141
    %169 = vmatpush1.bf16.msra.mxu0 %v140
    %170 = vmatprep.subr.bf16.mxu0 %v145
    %171 = vmatpush1.bf16.msra.mxu0 %v144
    %172 = vmatprep.subr.bf16.mxu0 %v149
    %173 = vmatpush1.bf16.msra.mxu0 %v148
    %174 = vmatprep.subr.bf16.mxu0 0
    %175 = vmatpush1.bf16.msra.mxu0 0
    %176 = vmatprep.subr.bf16.mxu0 0
    %177 = vmatpush1.bf16.msra.mxu0 0
    %178 = vmatprep.subr.bf16.mxu0 0
    %179 = vmatpush1.bf16.msra.mxu0 0
    %180 = vmatprep.subr.bf16.mxu0 0
    %181 = vmatpush1.bf16.msra.mxu0 0
    %182 = vmatprep.subr.bf16.mxu0 0
    %183 = vmatpush1.bf16.msra.mxu0 0
    %184 = vmatprep.subr.bf16.mxu0 0
    %185 = vmatpush1.bf16.msra.mxu0 0
    %186 = vmatprep.subr.bf16.mxu0 0
    %187 = vmatpush1.bf16.msra.mxu0 0
    %188 = vmatprep.subr.bf16.mxu0 0
    %189 = vmatpush1.bf16.msra.mxu0 0
    %190 = vmatprep.subr.bf16.mxu0 0
    %191 = vmatpush1.bf16.msra.mxu0 0
    %192 = vmatprep.subr.bf16.mxu0 0
    %193 = vmatpush1.bf16.msra.mxu0 0
    %194 = vmatprep.subr.bf16.mxu0 0
    %195 = vmatpush1.bf16.msra.mxu0 0
    %196 = vmatprep.subr.bf16.mxu0 0
    %197 = vmatpush1.bf16.msra.mxu0 0
    %198 = vmatprep.subr.bf16.mxu0 0
    %199 = vmatpush1.bf16.msra.mxu0 0
    %200 = vmatprep.mubr.bf16.mxu0 0
    %201 = vmatmul.mubr.bf16.gmra.mrb[0].mxu0 %v166
    %v202 = vpop.f32.mrb[0].mxu0
    %v203 = vadd.f32 %v87, %v202
    %v204 = vpop.f32.mrb[0].mxu0
    %v205 = vadd.f32 %v91, %v204
    %v206 = vpop.f32.mrb[0].mxu0
    %v207 = vpop.f32.mrb[0].mxu0
    %208 = vdwg.mxu0
    %209 = vmatprep.subr.bf16.mxu0 %v143
    %210 = vmatpush1.bf16.msra.mxu0 %v142
    %211 = vmatprep.subr.bf16.mxu0 %v147
    %212 = vmatpush1.bf16.msra.mxu0 %v146
    %213 = vmatprep.subr.bf16.mxu0 %v151
    %214 = vmatpush1.bf16.msra.mxu0 %v150
    %215 = vmatprep.subr.bf16.mxu0 0
    %216 = vmatpush1.bf16.msra.mxu0 0
    %217 = vmatprep.subr.bf16.mxu0 0
    %218 = vmatpush1.bf16.msra.mxu0 0
    %219 = vmatprep.subr.bf16.mxu0 0
    %220 = vmatpush1.bf16.msra.mxu0 0
    %221 = vmatprep.subr.bf16.mxu0 0
    %222 = vmatpush1.bf16.msra.mxu0 0
    %223 = vmatprep.subr.bf16.mxu0 0
    %224 = vmatpush1.bf16.msra.mxu0 0
    %225 = vmatprep.subr.bf16.mxu0 0
    %226 = vmatpush1.bf16.msra.mxu0 0
    %227 = vmatprep.subr.bf16.mxu0 0
    %228 = vmatpush1.bf16.msra.mxu0 0
    %229 = vmatprep.subr.bf16.mxu0 0
    %230 = vmatpush1.bf16.msra.mxu0 0
    %231 = vmatprep.subr.bf16.mxu0 0
    %232 = vmatpush1.bf16.msra.mxu0 0
    %233 = vmatprep.subr.bf16.mxu0 0
    %234 = vmatpush1.bf16.msra.mxu0 0
    %235 = vmatprep.subr.bf16.mxu0 0
    %236 = vmatpush1.bf16.msra.mxu0 0
    %237 = vmatprep.subr.bf16.mxu0 0
    %238 = vmatpush1.bf16.msra.mxu0 0
    %239 = vmatprep.subr.bf16.mxu0 0
    %240 = vmatpush1.bf16.msra.mxu0 0
    %241 = vmatprep.mubr.bf16.mxu0 0
    %242 = vmatmul.mubr.bf16.gmra.mrb[0].mxu0 %v166
    %v243 = vpop.f32.mrb[0].mxu0
    %v244 = vadd.f32 %v95, %v243
    %v245 = vpop.f32.mrb[0].mxu0
    %v246 = vadd.f32 %v99, %v245
    %v247 = vpop.f32.mrb[0].mxu0
    %v248 = vpop.f32.mrb[0].mxu0
    %249 = vdwg.mxu0
    %vm250 = vcmp.ge.f32.partialorder %v203, 0.0
    %vm251 = vcmp.ge.f32.partialorder %v205, 0.0
    %vm252 = vcmp.ge.f32.partialorder %v244, 0.0
    %vm253 = vcmp.ge.f32.partialorder %v246, 0.0
    %v254 = vmul.f32 %v203, 0.01
    %v255 = vmul.f32 %v205, 0.01
    %v256 = vmul.f32 %v244, 0.01
    %v257 = vmul.f32 %v246, 0.01
    %v258 = vsel %vm250, %v203, %v254
    %v259 = vsel %vm251, %v205, %v255
    %v260 = vsel %vm252, %v244, %v256
    %v261 = vsel %vm253, %v246, %v257
    %v262 = vpack.c.bf16 %v258, %v258
    %v263 = vpack.c.bf16 %v259, %v259
    %v264 = vpack.c.bf16 %v260, %v260
    %v265 = vpack.c.bf16 %v261, %v261
    %v266 = vld [vmem:[#allocation4] sm:$0xff]
    %v267 = vld [vmem:[#allocation4 + $0x8] sm:$0xf]
    %v268 = vld [vmem:[#allocation4 + $0xc] sm:$0xff]
    %v269 = vld [vmem:[#allocation4 + $0x14] sm:$0xf]
    %v270 = vld [vmem:[#allocation4 + $0x18] sm:$0xff]
    %v271 = vld [vmem:[#allocation4 + $0x20] sm:$0xf]
    %v272 = vld [vmem:[#allocation4 + $0x24] sm:$0xff]
    %v273 = vld [vmem:[#allocation4 + $0x2c] sm:$0xf]
    %v274 = vld [vmem:[#allocation4 + $0x30] sm:$0xff]
    %v275 = vld [vmem:[#allocation4 + $0x38] sm:$0xf]
    %v276 = vld [vmem:[#allocation4 + $0x3c] sm:$0xff]
    %v277 = vld [vmem:[#allocation4 + $0x44] sm:$0xf]
    %v278 = vld [vmem:[#allocation4 + $0x48] sm:$0xff]
    %v279 = vld [vmem:[#allocation4 + $0x50] sm:$0xf]
    %v280 = vld [vmem:[#allocation4 + $0x54] sm:$0xff]
    %v281 = vld [vmem:[#allocation4 + $0x5c] sm:$0xf]
    %v282 = vld [vmem:[#allocation4 + $0x60] sm:$0xff]
    %v283 = vld [vmem:[#allocation4 + $0x68] sm:$0xf]
    %v284 = vld [vmem:[#allocation4 + $0x6c] sm:$0xff]
    %v285 = vld [vmem:[#allocation4 + $0x74] sm:$0xf]
    %v286 = vld [vmem:[#allocation4 + $0x78] sm:$0xff]
    %v287 = vld [vmem:[#allocation4 + $0x80] sm:$0xf]
    %v288 = vld [vmem:[#allocation4 + $0x84] sm:$0xff]
    %v289 = vld [vmem:[#allocation4 + $0x8c] sm:$0xf]
    %v290 = vld [vmem:[#allocation4 + $0x90] sm:$0xff]
    %v291 = vld [vmem:[#allocation4 + $0x98] sm:$0xf]
    %v292 = vld [vmem:[#allocation4 + $0x9c] sm:$0xff]
    %v293 = vld [vmem:[#allocation4 + $0xa4] sm:$0xf]
    %v294 = vld [vmem:[#allocation4 + $0xa8] sm:$0xff]
    %v295 = vld [vmem:[#allocation4 + $0xb0] sm:$0xf]
    %v296 = vld [vmem:[#allocation4 + $0xb4] sm:$0xff]
    %v297 = vld [vmem:[#allocation4 + $0xbc] sm:$0xf]
    %v298 = vld [vmem:[#allocation4 + $0xc0] sm:$0xff]
    %v299 = vld [vmem:[#allocation4 + $0xc8] sm:$0xf]
    %v300 = vld [vmem:[#allocation4 + $0xcc] sm:$0xff]
    %v301 = vld [vmem:[#allocation4 + $0xd4] sm:$0xf]
    %v302 = vld [vmem:[#allocation4 + $0xd8] sm:$0xff]
    %v303 = vld [vmem:[#allocation4 + $0xe0] sm:$0xf]
    %v304 = vld [vmem:[#allocation4 + $0xe4] sm:$0xff]
    %v305 = vld [vmem:[#allocation4 + $0xec] sm:$0xf]
    %v306 = vld [vmem:[#allocation4 + $0xf0] sm:$0xff]
    %v307 = vld [vmem:[#allocation4 + $0xf8] sm:$0xf]
    %v308 = vld [vmem:[#allocation4 + $0xfc] sm:$0xff]
    %v309 = vld [vmem:[#allocation4 + $0x104] sm:$0xf]
    %v310 = vld [vmem:[#allocation4 + $0x108] sm:$0xff]
    %v311 = vld [vmem:[#allocation4 + $0x110] sm:$0xf]
    %v312 = vld [vmem:[#allocation4 + $0x114] sm:$0xff]
    %v313 = vld [vmem:[#allocation4 + $0x11c] sm:$0xf]
    %v314 = vld [vmem:[#allocation4 + $0x120] sm:$0xff]
    %v315 = vld [vmem:[#allocation4 + $0x128] sm:$0xf]
    %v316 = vld [vmem:[#allocation4 + $0x12c] sm:$0xff]
    %v317 = vld [vmem:[#allocation4 + $0x134] sm:$0xf]
    %v318 = vld [vmem:[#allocation4 + $0x138] sm:$0xff]
    %v319 = vld [vmem:[#allocation4 + $0x140] sm:$0xf]
    %v320 = vld [vmem:[#allocation4 + $0x144] sm:$0xff]
    %v321 = vld [vmem:[#allocation4 + $0x14c] sm:$0xf]
    %v322 = vld [vmem:[#allocation4 + $0x150] sm:$0xff]
    %v323 = vld [vmem:[#allocation4 + $0x158] sm:$0xf]
    %v324 = vld [vmem:[#allocation4 + $0x15c] sm:$0xff]
    %v325 = vld [vmem:[#allocation4 + $0x164] sm:$0xf]
    %v326 = vld [vmem:[#allocation4 + $0x168] sm:$0xff]
    %v327 = vld [vmem:[#allocation4 + $0x170] sm:$0xf]
    %v328 = vld [vmem:[#allocation4 + $0x174] sm:$0xff]
    %v329 = vld [vmem:[#allocation4 + $0x17c] sm:$0xf]
    %v330 = vld [vmem:[#allocation4 + $0x180] sm:$0xff]
    %v331 = vld [vmem:[#allocation4 + $0x188] sm:$0xf]
    %v332 = vld [vmem:[#allocation4 + $0x18c] sm:$0xff]
    %v333 = vld [vmem:[#allocation4 + $0x194] sm:$0xf]
    %v334 = vld [vmem:[#allocation4 + $0x198] sm:$0xff]
    %v335 = vld [vmem:[#allocation4 + $0x1a0] sm:$0xf]
    %v336 = vld [vmem:[#allocation4 + $0x1a4] sm:$0xff]
    %v337 = vld [vmem:[#allocation4 + $0x1ac] sm:$0xf]
    %v338 = vld [vmem:[#allocation4 + $0x1b0] sm:$0xff]
    %v339 = vld [vmem:[#allocation4 + $0x1b8] sm:$0xf]
    %v340 = vld [vmem:[#allocation4 + $0x1bc] sm:$0xff]
    %v341 = vld [vmem:[#allocation4 + $0x1c4] sm:$0xf]
    %v342 = vld [vmem:[#allocation4 + $0x1c8] sm:$0xff]
    %v343 = vld [vmem:[#allocation4 + $0x1d0] sm:$0xf]
    %v344 = vld [vmem:[#allocation4 + $0x1d4] sm:$0xff]
    %v345 = vld [vmem:[#allocation4 + $0x1dc] sm:$0xf]
    %v346 = vld [vmem:[#allocation4 + $0x1e0] sm:$0xff]
    %v347 = vld [vmem:[#allocation4 + $0x1e8] sm:$0xf]
    %v348 = vld [vmem:[#allocation4 + $0x1ec] sm:$0xff]
    %v349 = vld [vmem:[#allocation4 + $0x1f4] sm:$0xf]
    %v350 = vld [vmem:[#allocation4 + $0x1f8] sm:$0xff]
    %v351 = vld [vmem:[#allocation4 + $0x200] sm:$0xf]
    %v352 = vld [vmem:[#allocation4 + $0x204] sm:$0xff]
    %v353 = vld [vmem:[#allocation4 + $0x20c] sm:$0xf]
    %v354 = vld [vmem:[#allocation4 + $0x210] sm:$0xff]
    %v355 = vld [vmem:[#allocation4 + $0x218] sm:$0xf]
    %v356 = vld [vmem:[#allocation4 + $0x21c] sm:$0xff]
    %v357 = vld [vmem:[#allocation4 + $0x224] sm:$0xf]
    %v358 = vld [vmem:[#allocation4 + $0x228] sm:$0xff]
    %v359 = vld [vmem:[#allocation4 + $0x230] sm:$0xf]
    %v360 = vld [vmem:[#allocation4 + $0x234] sm:$0xff]
    %v361 = vld [vmem:[#allocation4 + $0x23c] sm:$0xf]
    %v362 = vld [vmem:[#allocation4 + $0x240] sm:$0xff]
    %v363 = vld [vmem:[#allocation4 + $0x248] sm:$0xf]
    %v364 = vld [vmem:[#allocation4 + $0x24c] sm:$0xff]
    %v365 = vld [vmem:[#allocation4 + $0x254] sm:$0xf]
    %v366 = vld [vmem:[#allocation4 + $0x258] sm:$0xff]
    %v367 = vld [vmem:[#allocation4 + $0x260] sm:$0xf]
    %v368 = vld [vmem:[#allocation4 + $0x264] sm:$0xff]
    %v369 = vld [vmem:[#allocation4 + $0x26c] sm:$0xf]
    %v370 = vld [vmem:[#allocation4 + $0x270] sm:$0xff]
    %v371 = vld [vmem:[#allocation4 + $0x278] sm:$0xf]
    %v372 = vld [vmem:[#allocation4 + $0x27c] sm:$0xff]
    %v373 = vld [vmem:[#allocation4 + $0x284] sm:$0xf]
    %v374 = vld [vmem:[#allocation4 + $0x288] sm:$0xff]
    %v375 = vld [vmem:[#allocation4 + $0x290] sm:$0xf]
    %v376 = vld [vmem:[#allocation4 + $0x294] sm:$0xff]
    %v377 = vld [vmem:[#allocation4 + $0x29c] sm:$0xf]
    %v378 = vld [vmem:[#allocation4 + $0x2a0] sm:$0xff]
    %v379 = vld [vmem:[#allocation4 + $0x2a8] sm:$0xf]
    %v380 = vld [vmem:[#allocation4 + $0x2ac] sm:$0xff]
    %v381 = vld [vmem:[#allocation4 + $0x2b4] sm:$0xf]
    %v382 = vld [vmem:[#allocation4 + $0x2b8] sm:$0xff]
    %v383 = vld [vmem:[#allocation4 + $0x2c0] sm:$0xf]
    %v384 = vld [vmem:[#allocation4 + $0x2c4] sm:$0xff]
    %v385 = vld [vmem:[#allocation4 + $0x2cc] sm:$0xf]
    %v386 = vld [vmem:[#allocation4 + $0x2d0] sm:$0xff]
    %v387 = vld [vmem:[#allocation4 + $0x2d8] sm:$0xf]
    %v388 = vld [vmem:[#allocation4 + $0x2dc] sm:$0xff]
    %v389 = vld [vmem:[#allocation4 + $0x2e4] sm:$0xf]
    %v390 = vld [vmem:[#allocation4 + $0x2e8] sm:$0xff]
    %v391 = vld [vmem:[#allocation4 + $0x2f0] sm:$0xf]
    %v392 = vld [vmem:[#allocation4 + $0x2f4] sm:$0xff]
    %v393 = vld [vmem:[#allocation4 + $0x2fc] sm:$0xf]
    %v394 = vld [vmem:[%s4] sm:$0x7]
    %v396 = vlaneseq
    %v397 = vshrl.u32 %v396, 7
    %v398 = vsub.s32 0, %v397
    %v399 = vrot.slane %v394, %v398
    %v400 = vlaneseq
    %v401 = vshrl.u32 %v400, 7
    %v402 = vsub.s32 1, %v401
    %v403 = vrot.slane %v394, %v402
    %v404 = vlaneseq
    %v405 = vshrl.u32 %v404, 7
    %v406 = vsub.s32 2, %v405
    %v407 = vrot.slane %v394, %v406
    %v539 = vunpack.c.l.b16 %v266
    %v540 = vunpack.c.h.b16 %v266
    %v541 = vunpack.c.l.b16 %v267
    %v542 = vunpack.c.l.b16 %v268
    %v543 = vunpack.c.h.b16 %v268
    %v544 = vunpack.c.l.b16 %v269
    %v545 = vunpack.c.l.b16 %v270
    %v546 = vunpack.c.h.b16 %v270
    %v547 = vunpack.c.l.b16 %v271
    %v548 = vunpack.c.l.b16 %v272
    %v549 = vunpack.c.h.b16 %v272
    %v550 = vunpack.c.l.b16 %v273
    %v551 = vunpack.c.l.b16 %v274
    %v552 = vunpack.c.h.b16 %v274
    %v553 = vunpack.c.l.b16 %v275
    %v554 = vunpack.c.l.b16 %v276
    %v555 = vunpack.c.h.b16 %v276
    %v556 = vunpack.c.l.b16 %v277
    %v557 = vunpack.c.l.b16 %v278
    %v558 = vunpack.c.h.b16 %v278
    %v559 = vunpack.c.l.b16 %v279
    %v560 = vunpack.c.l.b16 %v280
    %v561 = vunpack.c.h.b16 %v280
    %v562 = vunpack.c.l.b16 %v281
    %v563 = vunpack.c.l.b16 %v282
    %v564 = vunpack.c.h.b16 %v282
    %v565 = vunpack.c.l.b16 %v283
    %v566 = vunpack.c.l.b16 %v284
    %v567 = vunpack.c.h.b16 %v284
    %v568 = vunpack.c.l.b16 %v285
    %v569 = vunpack.c.l.b16 %v286
    %v570 = vunpack.c.h.b16 %v286
    %v571 = vunpack.c.l.b16 %v287
    %v572 = vunpack.c.l.b16 %v288
    %v573 = vunpack.c.h.b16 %v288
    %v574 = vunpack.c.l.b16 %v289
    %v575 = vunpack.c.l.b16 %v290
    %v576 = vunpack.c.h.b16 %v290
    %v577 = vunpack.c.l.b16 %v291
    %v578 = vunpack.c.l.b16 %v292
    %v579 = vunpack.c.h.b16 %v292
    %v580 = vunpack.c.l.b16 %v293
    %v581 = vunpack.c.l.b16 %v294
    %v582 = vunpack.c.h.b16 %v294
    %v583 = vunpack.c.l.b16 %v295
    %v584 = vunpack.c.l.b16 %v296
    %v585 = vunpack.c.h.b16 %v296
    %v586 = vunpack.c.l.b16 %v297
    %v587 = vunpack.c.l.b16 %v298
    %v588 = vunpack.c.h.b16 %v298
    %v589 = vunpack.c.l.b16 %v299
    %v590 = vunpack.c.l.b16 %v300
    %v591 = vunpack.c.h.b16 %v300
    %v592 = vunpack.c.l.b16 %v301
    %v593 = vunpack.c.l.b16 %v302
    %v594 = vunpack.c.h.b16 %v302
    %v595 = vunpack.c.l.b16 %v303
    %v596 = vunpack.c.l.b16 %v304
    %v597 = vunpack.c.h.b16 %v304
    %v598 = vunpack.c.l.b16 %v305
    %v599 = vunpack.c.l.b16 %v306
    %v600 = vunpack.c.h.b16 %v306
    %v601 = vunpack.c.l.b16 %v307
    %v602 = vunpack.c.l.b16 %v308
    %v603 = vunpack.c.h.b16 %v308
    %v604 = vunpack.c.l.b16 %v309
    %v605 = vunpack.c.l.b16 %v310
    %v606 = vunpack.c.h.b16 %v310
    %v607 = vunpack.c.l.b16 %v311
    %v608 = vunpack.c.l.b16 %v312
    %v609 = vunpack.c.h.b16 %v312
    %v610 = vunpack.c.l.b16 %v313
    %v611 = vunpack.c.l.b16 %v314
    %v612 = vunpack.c.h.b16 %v314
    %v613 = vunpack.c.l.b16 %v315
    %v614 = vunpack.c.l.b16 %v316
    %v615 = vunpack.c.h.b16 %v316
    %v616 = vunpack.c.l.b16 %v317
    %v617 = vunpack.c.l.b16 %v318
    %v618 = vunpack.c.h.b16 %v318
    %v619 = vunpack.c.l.b16 %v319
    %v620 = vunpack.c.l.b16 %v320
    %v621 = vunpack.c.h.b16 %v320
    %v622 = vunpack.c.l.b16 %v321
    %v623 = vunpack.c.l.b16 %v322
    %v624 = vunpack.c.h.b16 %v322
    %v625 = vunpack.c.l.b16 %v323
    %v626 = vunpack.c.l.b16 %v324
    %v627 = vunpack.c.h.b16 %v324
    %v628 = vunpack.c.l.b16 %v325
    %v629 = vunpack.c.l.b16 %v326
    %v630 = vunpack.c.h.b16 %v326
    %v631 = vunpack.c.l.b16 %v327
    %v632 = vunpack.c.l.b16 %v328
    %v633 = vunpack.c.h.b16 %v328
    %v634 = vunpack.c.l.b16 %v329
    %v635 = vunpack.c.l.b16 %v330
    %v636 = vunpack.c.h.b16 %v330
    %v637 = vunpack.c.l.b16 %v331
    %v638 = vunpack.c.l.b16 %v332
    %v639 = vunpack.c.h.b16 %v332
    %v640 = vunpack.c.l.b16 %v333
    %v641 = vunpack.c.l.b16 %v334
    %v642 = vunpack.c.h.b16 %v334
    %v643 = vunpack.c.l.b16 %v335
    %v644 = vunpack.c.l.b16 %v336
    %v645 = vunpack.c.h.b16 %v336
    %v646 = vunpack.c.l.b16 %v337
    %v647 = vunpack.c.l.b16 %v338
    %v648 = vunpack.c.h.b16 %v338
    %v649 = vunpack.c.l.b16 %v339
    %v650 = vunpack.c.l.b16 %v340
    %v651 = vunpack.c.h.b16 %v340
    %v652 = vunpack.c.l.b16 %v341
    %v653 = vunpack.c.l.b16 %v342
    %v654 = vunpack.c.h.b16 %v342
    %v655 = vunpack.c.l.b16 %v343
    %v656 = vunpack.c.l.b16 %v344
    %v657 = vunpack.c.h.b16 %v344
    %v658 = vunpack.c.l.b16 %v345
    %v659 = vunpack.c.l.b16 %v346
    %v660 = vunpack.c.h.b16 %v346
    %v661 = vunpack.c.l.b16 %v347
    %v662 = vunpack.c.l.b16 %v348
    %v663 = vunpack.c.h.b16 %v348
    %v664 = vunpack.c.l.b16 %v349
    %v665 = vunpack.c.l.b16 %v350
    %v666 = vunpack.c.h.b16 %v350
    %v667 = vunpack.c.l.b16 %v351
    %v668 = vunpack.c.l.b16 %v352
    %v669 = vunpack.c.h.b16 %v352
    %v670 = vunpack.c.l.b16 %v353
    %v671 = vunpack.c.l.b16 %v354
    %v672 = vunpack.c.h.b16 %v354
    %v673 = vunpack.c.l.b16 %v355
    %v674 = vunpack.c.l.b16 %v356
    %v675 = vunpack.c.h.b16 %v356
    %v676 = vunpack.c.l.b16 %v357
    %v677 = vunpack.c.l.b16 %v358
    %v678 = vunpack.c.h.b16 %v358
    %v679 = vunpack.c.l.b16 %v359
    %v680 = vunpack.c.l.b16 %v360
    %v681 = vunpack.c.h.b16 %v360
    %v682 = vunpack.c.l.b16 %v361
    %v683 = vunpack.c.l.b16 %v362
    %v684 = vunpack.c.h.b16 %v362
    %v685 = vunpack.c.l.b16 %v363
    %v686 = vunpack.c.l.b16 %v364
    %v687 = vunpack.c.h.b16 %v364
    %v688 = vunpack.c.l.b16 %v365
    %v689 = vunpack.c.l.b16 %v366
    %v690 = vunpack.c.h.b16 %v366
    %v691 = vunpack.c.l.b16 %v367
    %v692 = vunpack.c.l.b16 %v368
    %v693 = vunpack.c.h.b16 %v368
    %v694 = vunpack.c.l.b16 %v369
    %v695 = vunpack.c.l.b16 %v370
    %v696 = vunpack.c.h.b16 %v370
    %v697 = vunpack.c.l.b16 %v371
    %v698 = vunpack.c.l.b16 %v372
    %v699 = vunpack.c.h.b16 %v372
    %v700 = vunpack.c.l.b16 %v373
    %v701 = vunpack.c.l.b16 %v374
    %v702 = vunpack.c.h.b16 %v374
    %v703 = vunpack.c.l.b16 %v375
    %v704 = vunpack.c.l.b16 %v376
    %v705 = vunpack.c.h.b16 %v376
    %v706 = vunpack.c.l.b16 %v377
    %v707 = vunpack.c.l.b16 %v378
    %v708 = vunpack.c.h.b16 %v378
    %v709 = vunpack.c.l.b16 %v379
    %v710 = vunpack.c.l.b16 %v380
    %v711 = vunpack.c.h.b16 %v380
    %v712 = vunpack.c.l.b16 %v381
    %v713 = vunpack.c.l.b16 %v382
    %v714 = vunpack.c.h.b16 %v382
    %v715 = vunpack.c.l.b16 %v383
    %v716 = vunpack.c.l.b16 %v384
    %v717 = vunpack.c.h.b16 %v384
    %v718 = vunpack.c.l.b16 %v385
    %v719 = vunpack.c.l.b16 %v386
    %v720 = vunpack.c.h.b16 %v386
    %v721 = vunpack.c.l.b16 %v387
    %v722 = vunpack.c.l.b16 %v388
    %v723 = vunpack.c.h.b16 %v388
    %v724 = vunpack.c.l.b16 %v389
    %v725 = vunpack.c.l.b16 %v390
    %v726 = vunpack.c.h.b16 %v390
    %v727 = vunpack.c.l.b16 %v391
    %v728 = vunpack.c.l.b16 %v392
    %v729 = vunpack.c.h.b16 %v392
    %v730 = vunpack.c.l.b16 %v393
    %v731 = vpack.c.b16 %v542, %v539
    %v732 = vpack.c.b16 %v543, %v540
    %v733 = vpack.c.b16 %v544, %v541
    %v734 = vpack.c.b16 %v548, %v545
    %v735 = vpack.c.b16 %v549, %v546
    %v736 = vpack.c.b16 %v550, %v547
    %v737 = vpack.c.b16 %v554, %v551
    %v738 = vpack.c.b16 %v555, %v552
    %v739 = vpack.c.b16 %v556, %v553
    %v740 = vpack.c.b16 %v560, %v557
    %v741 = vpack.c.b16 %v561, %v558
    %v742 = vpack.c.b16 %v562, %v559
    %v743 = vpack.c.b16 %v566, %v563
    %v744 = vpack.c.b16 %v567, %v564
    %v745 = vpack.c.b16 %v568, %v565
    %v746 = vpack.c.b16 %v572, %v569
    %v747 = vpack.c.b16 %v573, %v570
    %v748 = vpack.c.b16 %v574, %v571
    %v749 = vpack.c.b16 %v578, %v575
    %v750 = vpack.c.b16 %v579, %v576
    %v751 = vpack.c.b16 %v580, %v577
    %v752 = vpack.c.b16 %v584, %v581
    %v753 = vpack.c.b16 %v585, %v582
    %v754 = vpack.c.b16 %v586, %v583
    %v755 = vpack.c.b16 %v590, %v587
    %v756 = vpack.c.b16 %v591, %v588
    %v757 = vpack.c.b16 %v592, %v589
    %v758 = vpack.c.b16 %v596, %v593
    %v759 = vpack.c.b16 %v597, %v594
    %v760 = vpack.c.b16 %v598, %v595
    %v761 = vpack.c.b16 %v602, %v599
    %v762 = vpack.c.b16 %v603, %v600
    %v763 = vpack.c.b16 %v604, %v601
    %v764 = vpack.c.b16 %v608, %v605
    %v765 = vpack.c.b16 %v609, %v606
    %v766 = vpack.c.b16 %v610, %v607
    %v767 = vpack.c.b16 %v614, %v611
    %v768 = vpack.c.b16 %v615, %v612
    %v769 = vpack.c.b16 %v616, %v613
    %v770 = vpack.c.b16 %v620, %v617
    %v771 = vpack.c.b16 %v621, %v618
    %v772 = vpack.c.b16 %v622, %v619
    %v773 = vpack.c.b16 %v626, %v623
    %v774 = vpack.c.b16 %v627, %v624
    %v775 = vpack.c.b16 %v628, %v625
    %v776 = vpack.c.b16 %v632, %v629
    %v777 = vpack.c.b16 %v633, %v630
    %v778 = vpack.c.b16 %v634, %v631
    %v779 = vpack.c.b16 %v638, %v635
    %v780 = vpack.c.b16 %v639, %v636
    %v781 = vpack.c.b16 %v640, %v637
    %v782 = vpack.c.b16 %v644, %v641
    %v783 = vpack.c.b16 %v645, %v642
    %v784 = vpack.c.b16 %v646, %v643
    %v785 = vpack.c.b16 %v650, %v647
    %v786 = vpack.c.b16 %v651, %v648
    %v787 = vpack.c.b16 %v652, %v649
    %v788 = vpack.c.b16 %v656, %v653
    %v789 = vpack.c.b16 %v657, %v654
    %v790 = vpack.c.b16 %v658, %v655
    %v791 = vpack.c.b16 %v662, %v659
    %v792 = vpack.c.b16 %v663, %v660
    %v793 = vpack.c.b16 %v664, %v661
    %v794 = vpack.c.b16 %v668, %v665
    %v795 = vpack.c.b16 %v669, %v666
    %v796 = vpack.c.b16 %v670, %v667
    %v797 = vpack.c.b16 %v674, %v671
    %v798 = vpack.c.b16 %v675, %v672
    %v799 = vpack.c.b16 %v676, %v673
    %v800 = vpack.c.b16 %v680, %v677
    %v801 = vpack.c.b16 %v681, %v678
    %v802 = vpack.c.b16 %v682, %v679
    %v803 = vpack.c.b16 %v686, %v683
    %v804 = vpack.c.b16 %v687, %v684
    %v805 = vpack.c.b16 %v688, %v685
    %v806 = vpack.c.b16 %v692, %v689
    %v807 = vpack.c.b16 %v693, %v690
    %v808 = vpack.c.b16 %v694, %v691
    %v809 = vpack.c.b16 %v698, %v695
    %v810 = vpack.c.b16 %v699, %v696
    %v811 = vpack.c.b16 %v700, %v697
    %v812 = vpack.c.b16 %v704, %v701
    %v813 = vpack.c.b16 %v705, %v702
    %v814 = vpack.c.b16 %v706, %v703
    %v815 = vpack.c.b16 %v710, %v707
    %v816 = vpack.c.b16 %v711, %v708
    %v817 = vpack.c.b16 %v712, %v709
    %v818 = vpack.c.b16 %v716, %v713
    %v819 = vpack.c.b16 %v717, %v714
    %v820 = vpack.c.b16 %v718, %v715
    %v821 = vpack.c.b16 %v722, %v719
    %v822 = vpack.c.b16 %v723, %v720
    %v823 = vpack.c.b16 %v724, %v721
    %v824 = vpack.c.b16 %v728, %v725
    %v825 = vpack.c.b16 %v729, %v726
    %v826 = vpack.c.b16 %v730, %v727
    %923 = vmatprep.subr.bf16.mxu0 %v732
    %924 = vmatpush1.bf16.msra.mxu0 %v731
    %925 = vmatprep.subr.bf16.mxu0 %v735
    %926 = vmatpush1.bf16.msra.mxu0 %v734
    %927 = vmatprep.subr.bf16.mxu0 %v738
    %928 = vmatpush1.bf16.msra.mxu0 %v737
    %929 = vmatprep.subr.bf16.mxu0 %v741
    %930 = vmatpush1.bf16.msra.mxu0 %v740
    %931 = vmatprep.subr.bf16.mxu0 %v744
    %932 = vmatpush1.bf16.msra.mxu0 %v743
    %933 = vmatprep.subr.bf16.mxu0 %v747
    %934 = vmatpush1.bf16.msra.mxu0 %v746
    %935 = vmatprep.subr.bf16.mxu0 %v750
    %936 = vmatpush1.bf16.msra.mxu0 %v749
    %937 = vmatprep.subr.bf16.mxu0 %v753
    %938 = vmatpush1.bf16.msra.mxu0 %v752
    %939 = vmatprep.subr.bf16.mxu0 %v756
    %940 = vmatpush1.bf16.msra.mxu0 %v755
    %941 = vmatprep.subr.bf16.mxu0 %v759
    %942 = vmatpush1.bf16.msra.mxu0 %v758
    %943 = vmatprep.subr.bf16.mxu0 %v762
    %944 = vmatpush1.bf16.msra.mxu0 %v761
    %945 = vmatprep.subr.bf16.mxu0 %v765
    %946 = vmatpush1.bf16.msra.mxu0 %v764
    %947 = vmatprep.subr.bf16.mxu0 %v768
    %948 = vmatpush1.bf16.msra.mxu0 %v767
    %949 = vmatprep.subr.bf16.mxu0 %v771
    %950 = vmatpush1.bf16.msra.mxu0 %v770
    %951 = vmatprep.subr.bf16.mxu0 %v774
    %952 = vmatpush1.bf16.msra.mxu0 %v773
    %953 = vmatprep.subr.bf16.mxu0 %v777
    %954 = vmatpush1.bf16.msra.mxu0 %v776
    %955 = vmatprep.mubr.bf16.mxu0 %v263
    %956 = vmatmul.mubr.bf16.gmra.mrb[0].mxu0 %v262
    %v957 = vpop.f32.mrb[0].mxu0
    %v958 = vadd.f32 %v399, %v957
    %v959 = vpop.f32.mrb[0].mxu0
    %v960 = vadd.f32 %v403, %v959
    %v961 = vpop.f32.mrb[0].mxu0
    %v962 = vpop.f32.mrb[0].mxu0
    %963 = vdwg.mxu0
    %964 = vmatprep.subr.bf16.mxu0 %v780
    %965 = vmatpush1.bf16.msra.mxu0 %v779
    %966 = vmatprep.subr.bf16.mxu0 %v783
    %967 = vmatpush1.bf16.msra.mxu0 %v782
    %968 = vmatprep.subr.bf16.mxu0 %v786
    %969 = vmatpush1.bf16.msra.mxu0 %v785
    %970 = vmatprep.subr.bf16.mxu0 %v789
    %971 = vmatpush1.bf16.msra.mxu0 %v788
    %972 = vmatprep.subr.bf16.mxu0 %v792
    %973 = vmatpush1.bf16.msra.mxu0 %v791
    %974 = vmatprep.subr.bf16.mxu0 %v795
    %975 = vmatpush1.bf16.msra.mxu0 %v794
    %976 = vmatprep.subr.bf16.mxu0 %v798
    %977 = vmatpush1.bf16.msra.mxu0 %v797
    %978 = vmatprep.subr.bf16.mxu0 %v801
    %979 = vmatpush1.bf16.msra.mxu0 %v800
    %980 = vmatprep.subr.bf16.mxu0 %v804
    %981 = vmatpush1.bf16.msra.mxu0 %v803
    %982 = vmatprep.subr.bf16.mxu0 %v807
    %983 = vmatpush1.bf16.msra.mxu0 %v806
    %984 = vmatprep.subr.bf16.mxu0 %v810
    %985 = vmatpush1.bf16.msra.mxu0 %v809
    %986 = vmatprep.subr.bf16.mxu0 %v813
    %987 = vmatpush1.bf16.msra.mxu0 %v812
    %988 = vmatprep.subr.bf16.mxu0 %v816
    %989 = vmatpush1.bf16.msra.mxu0 %v815
    %990 = vmatprep.subr.bf16.mxu0 %v819
    %991 = vmatpush1.bf16.msra.mxu0 %v818
    %992 = vmatprep.subr.bf16.mxu0 %v822
    %993 = vmatpush1.bf16.msra.mxu0 %v821
    %994 = vmatprep.subr.bf16.mxu0 %v825
    %995 = vmatpush1.bf16.msra.mxu0 %v824
    %996 = vmatprep.mubr.bf16.mxu0 %v265
    %997 = vmatmul.mubr.bf16.gmra.mrb[0].mxu0 %v264
    %v998 = vpop.f32.mrb[0].mxu0
    %v999 = vadd.f32 %v958, %v998
    %v1000 = vpop.f32.mrb[0].mxu0
    %v1001 = vadd.f32 %v960, %v1000
    %v1002 = vpop.f32.mrb[0].mxu0
    %v1003 = vpop.f32.mrb[0].mxu0
    %1004 = vdwg.mxu0
    %1005 = vmatprep.subr.bf16.mxu0 0
    %1006 = vmatpush1.bf16.msra.mxu0 %v733
    %1007 = vmatprep.subr.bf16.mxu0 0
    %1008 = vmatpush1.bf16.msra.mxu0 %v736
    %1009 = vmatprep.subr.bf16.mxu0 0
    %1010 = vmatpush1.bf16.msra.mxu0 %v739
    %1011 = vmatprep.subr.bf16.mxu0 0
    %1012 = vmatpush1.bf16.msra.mxu0 %v742
    %1013 = vmatprep.subr.bf16.mxu0 0
    %1014 = vmatpush1.bf16.msra.mxu0 %v745
    %1015 = vmatprep.subr.bf16.mxu0 0
    %1016 = vmatpush1.bf16.msra.mxu0 %v748
    %1017 = vmatprep.subr.bf16.mxu0 0
    %1018 = vmatpush1.bf16.msra.mxu0 %v751
    %1019 = vmatprep.subr.bf16.mxu0 0
    %1020 = vmatpush1.bf16.msra.mxu0 %v754
    %1021 = vmatprep.subr.bf16.mxu0 0
    %1022 = vmatpush1.bf16.msra.mxu0 %v757
    %1023 = vmatprep.subr.bf16.mxu0 0
    %1024 = vmatpush1.bf16.msra.mxu0 %v760
    %1025 = vmatprep.subr.bf16.mxu0 0
    %1026 = vmatpush1.bf16.msra.mxu0 %v763
    %1027 = vmatprep.subr.bf16.mxu0 0
    %1028 = vmatpush1.bf16.msra.mxu0 %v766
    %1029 = vmatprep.subr.bf16.mxu0 0
    %1030 = vmatpush1.bf16.msra.mxu0 %v769
    %1031 = vmatprep.subr.bf16.mxu0 0
    %1032 = vmatpush1.bf16.msra.mxu0 %v772
    %1033 = vmatprep.subr.bf16.mxu0 0
    %1034 = vmatpush1.bf16.msra.mxu0 %v775
    %1035 = vmatprep.subr.bf16.mxu0 0
    %1036 = vmatpush1.bf16.msra.mxu0 %v778
    %1037 = vmatprep.mubr.bf16.mxu0 %v263
    %1038 = vmatmul.mubr.bf16.gmra.mrb[0].mxu0 %v262
    %v1039 = vpop.f32.mrb[0].mxu0
    %v1040 = vadd.f32 %v407, %v1039
    %v1041 = vpop.f32.mrb[0].mxu0
    %v1042 = vpop.f32.mrb[0].mxu0
    %v1043 = vpop.f32.mrb[0].mxu0
    %1044 = vdwg.mxu0
    %1045 = vmatprep.subr.bf16.mxu0 0
    %1046 = vmatpush1.bf16.msra.mxu0 %v781
    %1047 = vmatprep.subr.bf16.mxu0 0
    %1048 = vmatpush1.bf16.msra.mxu0 %v784
    %1049 = vmatprep.subr.bf16.mxu0 0
    %1050 = vmatpush1.bf16.msra.mxu0 %v787
    %1051 = vmatprep.subr.bf16.mxu0 0
    %1052 = vmatpush1.bf16.msra.mxu0 %v790
    %1053 = vmatprep.subr.bf16.mxu0 0
    %1054 = vmatpush1.bf16.msra.mxu0 %v793
    %1055 = vmatprep.subr.bf16.mxu0 0
    %1056 = vmatpush1.bf16.msra.mxu0 %v796
    %1057 = vmatprep.subr.bf16.mxu0 0
    %1058 = vmatpush1.bf16.msra.mxu0 %v799
    %1059 = vmatprep.subr.bf16.mxu0 0
    %1060 = vmatpush1.bf16.msra.mxu0 %v802
    %1061 = vmatprep.subr.bf16.mxu0 0
    %1062 = vmatpush1.bf16.msra.mxu0 %v805
    %1063 = vmatprep.subr.bf16.mxu0 0
    %1064 = vmatpush1.bf16.msra.mxu0 %v808
    %1065 = vmatprep.subr.bf16.mxu0 0
    %1066 = vmatpush1.bf16.msra.mxu0 %v811
    %1067 = vmatprep.subr.bf16.mxu0 0
    %1068 = vmatpush1.bf16.msra.mxu0 %v814
    %1069 = vmatprep.subr.bf16.mxu0 0
    %1070 = vmatpush1.bf16.msra.mxu0 %v817
    %1071 = vmatprep.subr.bf16.mxu0 0
    %1072 = vmatpush1.bf16.msra.mxu0 %v820
    %1073 = vmatprep.subr.bf16.mxu0 0
    %1074 = vmatpush1.bf16.msra.mxu0 %v823
    %1075 = vmatprep.subr.bf16.mxu0 0
    %1076 = vmatpush1.bf16.msra.mxu0 %v826
    %1077 = vmatprep.mubr.bf16.mxu0 %v265
    %1078 = vmatmul.mubr.bf16.gmra.mrb[0].mxu0 %v264
    %v1079 = vpop.f32.mrb[0].mxu0
    %v1080 = vadd.f32 %v1040, %v1079
    %v1081 = vpop.f32.mrb[0].mxu0
    %v1082 = vpop.f32.mrb[0].mxu0
    %v1083 = vpop.f32.mrb[0].mxu0
    %1084 = vdwg.mxu0
    %vm1085 = vcmp.ge.f32.partialorder %v999, 0.0
    %vm1086 = vcmp.ge.f32.partialorder %v1001, 0.0
    %vm1087 = vcmp.ge.f32.partialorder %v1080, 0.0
    %v1088 = vmul.f32 %v999, 0.01
    %v1089 = vmul.f32 %v1001, 0.01
    %v1090 = vmul.f32 %v1080, 0.01
    %v1091 = vsel %vm1085, %v999, %v1088
    %v1092 = vsel %vm1086, %v1001, %v1089
    %v1093 = vsel %vm1087, %v1080, %v1090
    %v1094 = vld [vmem:[#allocation6] sm:$0xff]
    %v1095 = vld [vmem:[#allocation6 + $0x8] sm:$0xff]
    %v1096 = vld [vmem:[#allocation6 + $0x10] sm:$0xff]
    %v1097 = vld [vmem:[#allocation6 + $0x18] sm:$0xff]
    %v1098 = vld [vmem:[#allocation6 + $0x20] sm:$0xff]
    %v1099 = vld [vmem:[#allocation6 + $0x28] sm:$0xff]
    %v1100 = vld [vmem:[#allocation6 + $0x30] sm:$0xff]
    %v1101 = vld [vmem:[#allocation6 + $0x38] sm:$0xff]
    %v1102 = vld [vmem:[#allocation6 + $0x40] sm:$0xff]
    %v1103 = vld [vmem:[#allocation6 + $0x48] sm:$0xff]
    %v1104 = vld [vmem:[#allocation6 + $0x50] sm:$0xff]
    %v1105 = vld [vmem:[#allocation6 + $0x58] sm:$0xff]
    %v1106 = vld [vmem:[#allocation6 + $0x60] sm:$0xff]
    %v1107 = vld [vmem:[#allocation6 + $0x68] sm:$0xff]
    %v1108 = vld [vmem:[#allocation6 + $0x70] sm:$0xff]
    %v1109 = vld [vmem:[#allocation6 + $0x78] sm:$0xff]
    %v1110 = vld [vmem:[#allocation6 + $0x80] sm:$0xff]
    %v1111 = vld [vmem:[#allocation6 + $0x88] sm:$0xff]
    %v1112 = vld [vmem:[#allocation6 + $0x90] sm:$0xff]
    %v1113 = vld [vmem:[#allocation6 + $0x98] sm:$0xff]
    %v1114 = vld [vmem:[#allocation6 + $0xa0] sm:$0xff]
    %v1115 = vld [vmem:[#allocation6 + $0xa8] sm:$0xff]
    %v1116 = vld [vmem:[#allocation6 + $0xb0] sm:$0xff]
    %v1117 = vld [vmem:[#allocation6 + $0xb8] sm:$0xff]
    %v1118 = vld [vmem:[#allocation6 + $0xc0] sm:$0xff]
    %v1119 = vld [vmem:[#allocation6 + $0xc8] sm:$0xff]
    %v1120 = vld [vmem:[#allocation6 + $0xd0] sm:$0xff]
    %v1121 = vld [vmem:[#allocation6 + $0xd8] sm:$0xff]
    %v1122 = vld [vmem:[#allocation6 + $0xe0] sm:$0xff]
    %v1123 = vld [vmem:[#allocation6 + $0xe8] sm:$0xff]
    %v1124 = vld [vmem:[#allocation6 + $0xf0] sm:$0xff]
    %v1125 = vld [vmem:[#allocation6 + $0xf8] sm:$0xff]
    %v1126 = vld [vmem:[#allocation6 + $0x100] sm:$0xff]
    %v1127 = vld [vmem:[#allocation6 + $0x108] sm:$0xff]
    %v1128 = vld [vmem:[#allocation6 + $0x110] sm:$0xff]
    %v1129 = vld [vmem:[#allocation6 + $0x118] sm:$0xff]
    %v1130 = vld [vmem:[#allocation6 + $0x120] sm:$0xff]
    %v1131 = vld [vmem:[#allocation6 + $0x128] sm:$0xff]
    %v1132 = vld [vmem:[#allocation6 + $0x130] sm:$0xff]
    %v1133 = vld [vmem:[#allocation6 + $0x138] sm:$0xff]
    %v1134 = vld [vmem:[#allocation6 + $0x140] sm:$0xff]
    %v1135 = vld [vmem:[#allocation6 + $0x148] sm:$0xff]
    %v1136 = vld [vmem:[#allocation6 + $0x150] sm:$0xff]
    %v1137 = vld [vmem:[#allocation6 + $0x158] sm:$0xff]
    %v1138 = vld [vmem:[#allocation6 + $0x160] sm:$0xff]
    %v1139 = vld [vmem:[#allocation6 + $0x168] sm:$0xff]
    %v1140 = vld [vmem:[#allocation6 + $0x170] sm:$0xff]
    %v1141 = vld [vmem:[#allocation6 + $0x178] sm:$0xff]
    %v1142 = vld [vmem:[%s6] sm:$0x1]
    %v1144 = vlaneseq
    %v1145 = vshrl.u32 %v1144, 7
    %v1146 = vsub.s32 0, %v1145
    %v1147 = vrot.slane %v1142, %v1146
    %1149 = vmatprep.subr.mxu0 0.0
    %1150 = vmatpush1.msra.mxu0 %v1094
    %1151 = vmatprep.subr.mxu0 0.0
    %1152 = vmatpush1.msra.mxu0 %v1095
    %1153 = vmatprep.subr.mxu0 0.0
    %1154 = vmatpush1.msra.mxu0 %v1096
    %1155 = vmatprep.subr.mxu0 0.0
    %1156 = vmatpush1.msra.mxu0 %v1097
    %1157 = vmatprep.subr.mxu0 0.0
    %1158 = vmatpush1.msra.mxu0 %v1098
    %1159 = vmatprep.subr.mxu0 0.0
    %1160 = vmatpush1.msra.mxu0 %v1099
    %1161 = vmatprep.subr.mxu0 0.0
    %1162 = vmatpush1.msra.mxu0 %v1100
    %1163 = vmatprep.subr.mxu0 0.0
    %1164 = vmatpush1.msra.mxu0 %v1101
    %1165 = vmatprep.subr.mxu0 0.0
    %1166 = vmatpush1.msra.mxu0 %v1102
    %1167 = vmatprep.subr.mxu0 0.0
    %1168 = vmatpush1.msra.mxu0 %v1103
    %1169 = vmatprep.subr.mxu0 0.0
    %1170 = vmatpush1.msra.mxu0 %v1104
    %1171 = vmatprep.subr.mxu0 0.0
    %1172 = vmatpush1.msra.mxu0 %v1105
    %1173 = vmatprep.subr.mxu0 0.0
    %1174 = vmatpush1.msra.mxu0 %v1106
    %1175 = vmatprep.subr.mxu0 0.0
    %1176 = vmatpush1.msra.mxu0 %v1107
    %1177 = vmatprep.subr.mxu0 0.0
    %1178 = vmatpush1.msra.mxu0 %v1108
    %1179 = vmatprep.subr.mxu0 0.0
    %1180 = vmatpush1.msra.mxu0 %v1109
    %1181 = vmatprep.subr.mxu0 0.0
    %1182 = vmatpush1.msra.mxu0 %v1110
    %1183 = vmatprep.subr.mxu0 0.0
    %1184 = vmatpush1.msra.mxu0 %v1111
    %1185 = vmatprep.subr.mxu0 0.0
    %1186 = vmatpush1.msra.mxu0 %v1112
    %1187 = vmatprep.subr.mxu0 0.0
    %1188 = vmatpush1.msra.mxu0 %v1113
    %1189 = vmatprep.subr.mxu0 0.0
    %1190 = vmatpush1.msra.mxu0 %v1114
    %1191 = vmatprep.subr.mxu0 0.0
    %1192 = vmatpush1.msra.mxu0 %v1115
    %1193 = vmatprep.subr.mxu0 0.0
    %1194 = vmatpush1.msra.mxu0 %v1116
    %1195 = vmatprep.subr.mxu0 0.0
    %1196 = vmatpush1.msra.mxu0 %v1117
    %1197 = vmatprep.subr.mxu0 0.0
    %1198 = vmatpush1.msra.mxu0 %v1118
    %1199 = vmatprep.subr.mxu0 0.0
    %1200 = vmatpush1.msra.mxu0 %v1119
    %1201 = vmatprep.subr.mxu0 0.0
    %1202 = vmatpush1.msra.mxu0 %v1120
    %1203 = vmatprep.subr.mxu0 0.0
    %1204 = vmatpush1.msra.mxu0 %v1121
    %1205 = vmatprep.subr.mxu0 0.0
    %1206 = vmatpush1.msra.mxu0 %v1122
    %1207 = vmatprep.subr.mxu0 0.0
    %1208 = vmatpush1.msra.mxu0 %v1123
    %1209 = vmatprep.subr.mxu0 0.0
    %1210 = vmatpush1.msra.mxu0 %v1124
    %1211 = vmatprep.subr.mxu0 0.0
    %1212 = vmatpush1.msra.mxu0 %v1125
    %1213 = vmatprep.mubr.f32.mxu0 %v1092
    %1214 = vmatmul.mubr.f32.gmra.mrb[0].mxu0 %v1091
    %v1215 = vpop.f32.mrb[0].mxu0
    %v1216 = vadd.f32 %v1147, %v1215
    %v1217 = vpop.f32.mrb[0].mxu0
    %1218 = vdwg.mxu0
    %1219 = vmatprep.subr.mxu0 0.0
    %1220 = vmatpush1.msra.mxu0 %v1126
    %1221 = vmatprep.subr.mxu0 0.0
    %1222 = vmatpush1.msra.mxu0 %v1127
    %1223 = vmatprep.subr.mxu0 0.0
    %1224 = vmatpush1.msra.mxu0 %v1128
    %1225 = vmatprep.subr.mxu0 0.0
    %1226 = vmatpush1.msra.mxu0 %v1129
    %1227 = vmatprep.subr.mxu0 0.0
    %1228 = vmatpush1.msra.mxu0 %v1130
    %1229 = vmatprep.subr.mxu0 0.0
    %1230 = vmatpush1.msra.mxu0 %v1131
    %1231 = vmatprep.subr.mxu0 0.0
    %1232 = vmatpush1.msra.mxu0 %v1132
    %1233 = vmatprep.subr.mxu0 0.0
    %1234 = vmatpush1.msra.mxu0 %v1133
    %1235 = vmatprep.subr.mxu0 0.0
    %1236 = vmatpush1.msra.mxu0 %v1134
    %1237 = vmatprep.subr.mxu0 0.0
    %1238 = vmatpush1.msra.mxu0 %v1135
    %1239 = vmatprep.subr.mxu0 0.0
    %1240 = vmatpush1.msra.mxu0 %v1136
    %1241 = vmatprep.subr.mxu0 0.0
    %1242 = vmatpush1.msra.mxu0 %v1137
    %1243 = vmatprep.subr.mxu0 0.0
    %1244 = vmatpush1.msra.mxu0 %v1138
    %1245 = vmatprep.subr.mxu0 0.0
    %1246 = vmatpush1.msra.mxu0 %v1139
    %1247 = vmatprep.subr.mxu0 0.0
    %1248 = vmatpush1.msra.mxu0 %v1140
    %1249 = vmatprep.subr.mxu0 0.0
    %1250 = vmatpush1.msra.mxu0 %v1141
    %1251 = vmatprep.subr.mxu0 0.0
    %1252 = vmatpush1.msra.mxu0 0.0
    %1253 = vmatprep.subr.mxu0 0.0
    %1254 = vmatpush1.msra.mxu0 0.0
    %1255 = vmatprep.subr.mxu0 0.0
    %1256 = vmatpush1.msra.mxu0 0.0
    %1257 = vmatprep.subr.mxu0 0.0
    %1258 = vmatpush1.msra.mxu0 0.0
    %1259 = vmatprep.subr.mxu0 0.0
    %1260 = vmatpush1.msra.mxu0 0.0
    %1261 = vmatprep.subr.mxu0 0.0
    %1262 = vmatpush1.msra.mxu0 0.0
    %1263 = vmatprep.subr.mxu0 0.0
    %1264 = vmatpush1.msra.mxu0 0.0
    %1265 = vmatprep.subr.mxu0 0.0
    %1266 = vmatpush1.msra.mxu0 0.0
    %1267 = vmatprep.subr.mxu0 0.0
    %1268 = vmatpush1.msra.mxu0 0.0
    %1269 = vmatprep.subr.mxu0 0.0
    %1270 = vmatpush1.msra.mxu0 0.0
    %1271 = vmatprep.subr.mxu0 0.0
    %1272 = vmatpush1.msra.mxu0 0.0
    %1273 = vmatprep.subr.mxu0 0.0
    %1274 = vmatpush1.msra.mxu0 0.0
    %1275 = vmatprep.subr.mxu0 0.0
    %1276 = vmatpush1.msra.mxu0 0.0
    %1277 = vmatprep.subr.mxu0 0.0
    %1278 = vmatpush1.msra.mxu0 0.0
    %1279 = vmatprep.subr.mxu0 0.0
    %1280 = vmatpush1.msra.mxu0 0.0
    %1281 = vmatprep.subr.mxu0 0.0
    %1282 = vmatpush1.msra.mxu0 0.0
    %1283 = vmatprep.mubr.f32.mxu0 0.0
    %1284 = vmatmul.mubr.f32.gmra.mrb[0].mxu0 %v1093
    %v1285 = vpop.f32.mrb[0].mxu0
    %v1286 = vadd.f32 %v1216, %v1285
    %v1287 = vpop.f32.mrb[0].mxu0
    %1288 = vdwg.mxu0
    %vm1289 = vcmp.ge.f32.partialorder %v1286, 0.0
    %v1290 = vmul.f32 %v1286, 0.01
    %v1291 = vsel %vm1289, %v1286, %v1290
    %v1292 = vtanh.pop %v1291
    %1293 = vst [vmem:[%s7] sm:$0xff] %v1292
    // Predicated region
    $region42: #{_actor_forward.1} parent=1 // pred_check
      _
    $region43: #{_actor_forward.1} parent=1 // pred_check_branch
      %1295 = sbr.rel (0) target = $region45
    $region44: #{_actor_forward.1} parent=1 // pred_region
      _
    $region45: #{_actor_forward.1} parent=1 // pred_fallthru
      _
    // Predicated region
    $region46: #{_actor_forward.1} parent=1 // pred_check
      _
    $region47: #{_actor_forward.1} parent=1 // pred_check_branch
      %1297 = sbr.rel (0) target = $region49
    $region48: #{_actor_forward.1} parent=1 // pred_region
      _
    $region49: #{_actor_forward.1} parent=1 // pred_fallthru
      _
    %1298 = vsyncpa [#allocation3], 1
    %1299 = vsyncpa [#allocation5], 1

</llo_original>
